<compile_context>
chip_gen: v5e
topology: v5e:2x2
jax: 0.10.0
libtpu: 0.0.40
codegen_flags: <defaults>
</compile_context>

<pallas_src>
import functools

import jax
import jax.numpy as jnp
from jax.experimental import pallas as pl
from jax.experimental.pallas import tpu as pltpu


def _round_up(x, m):
    return (x + m - 1) // m * m


def _mlp_kernel(x_ref, w1_ref, b1_ref, w2_ref, b2_ref, o_ref):
    # Cast x to the weight/compute dtype inside the kernel (VPU pack, hidden under
    # the DMA/MXU) instead of a separate XLA pass in the wrapper.
    x = x_ref[...].astype(w1_ref.dtype)
    # Layer 1: x @ W1^T (MXU, f32 accumulate), bias + ReLU in f32.
    h = jnp.dot(x, w1_ref[...], preferred_element_type=jnp.float32)
    h = jnp.maximum(h + b1_ref[...], 0.0)
    # Layer 2: cast activations to the weight dtype for the MXU, accumulate in f32.
    out = jnp.dot(h.astype(w2_ref.dtype), w2_ref[...],
                  preferred_element_type=jnp.float32)
    o_ref[...] = (out + b2_ref[...]).astype(o_ref.dtype)


def prepare_params(w1, b1, w2, b2, *, dtype=jnp.float32):
    """One-time parameter prep (hoisted out of the per-call hot path).

    PyTorch Linear layouts: w1: (500, F), b1: (500,), w2: (20, 500), b2: (20,).
    Returns:
      w1_t: (F, 512)  dtype      (transposed, hidden padded 500 -> 512 with zeros)
      b1_p: (1, 512)  float32    (zero-padded)
      w2_t: (512, 20) dtype      (transposed, padded rows are zero)
      b2_p: (1, 20)   float32
    Padding is exact: padded hidden lanes are ReLU(0 + 0) = 0 and hit zero W2 rows.
    """
    hidden, f_in = w1.shape
    out_dim = w2.shape[0]
    hp = _round_up(hidden, 128)   # 500 -> 512

    w1_t = jnp.zeros((f_in, hp), dtype).at[:, :hidden].set(w1.T.astype(dtype))
    b1_p = jnp.zeros((1, hp), jnp.float32).at[:, :hidden].set(b1.astype(jnp.float32))
    w2_t = jnp.zeros((hp, out_dim), dtype).at[:hidden, :].set(w2.T.astype(dtype))
    b2_p = b2.astype(jnp.float32).reshape(1, out_dim)
    return w1_t, b1_p, w2_t, b2_p


def net_forward(x, w1_t, b1_p, w2_t, b2_p, *, block_m=1024):
    """Forward pass. x: (B, F) float -> (B, out_dim) float32."""
    B, f_in = x.shape
    hp = w1_t.shape[1]
    out_dim = w2_t.shape[1]

    # Batch tile: multiple of 16 (covers the bf16 sublane pack; f32 only needs 8),
    # split small batches into >= 2 tiles so both v7x TensorCores get work via the
    # "parallel" grid axis, and cap at block_m so double-buffered tiles fit the
    # scoped-VMEM defaults on every generation (v5e 16 MiB included at tm=1024).
    tm = min(block_m, max(16, _round_up(pl.cdiv(B, 2), 16)))
    grid_m = pl.cdiv(B, tm)   # ragged edge handled by Pallas (clipped loads/stores)

    flops = 2 * B * (f_in * hp + hp * out_dim)
    bytes_accessed = (
        x.size * x.dtype.itemsize
        + B * out_dim * 4
        + w1_t.size * w1_t.dtype.itemsize
        + w2_t.size * w2_t.dtype.itemsize
        + b1_p.size * 4 + b2_p.size * 4
    )

    out = pl.pallas_call(
        _mlp_kernel,
        out_shape=jax.ShapeDtypeStruct((B, out_dim), jnp.float32),
        grid_spec=pltpu.PrefetchScalarGridSpec(
            num_scalar_prefetch=0,
            grid=(grid_m,),
            in_specs=[
                pl.BlockSpec((tm, f_in), lambda i: (i, 0)),       # streamed x tile
                pl.BlockSpec((f_in, hp), lambda i: (0, 0)),       # resident W1^T
                pl.BlockSpec((1, hp), lambda i: (0, 0)),          # resident b1
                pl.BlockSpec((hp, out_dim), lambda i: (0, 0)),    # resident W2^T
                pl.BlockSpec((1, out_dim), lambda i: (0, 0)),     # resident b2
            ],
            out_specs=pl.BlockSpec((tm, out_dim), lambda i: (i, 0)),  # true-width out
        ),
        compiler_params=pltpu.CompilerParams(
            dimension_semantics=("parallel",),   # megacore sharding on v7x
        ),
        cost_estimate=pl.CostEstimate(
            flops=flops, transcendentals=0, bytes_accessed=bytes_accessed),
    )(x, w1_t, b1_p, w2_t, b2_p)

    return out


def _ref_forward(x, w1, b1, w2, b2):
    h = jnp.maximum(x @ w1.T + b1, 0.0)
    return h @ w2.T + b2


if __name__ == "__main__":
    feature_num = 32
    batch = 72          # not a tile multiple -> exercises ragged-edge grid handling
    hidden = 500
    out_dim = 20

    key = jax.random.PRNGKey(0)
    kx, k1, k2, k3, k4 = jax.random.split(key, 5)

    # Deterministic synthetic params (PyTorch Linear shapes: (out, in) / (out,)).
    x = jax.random.normal(kx, (batch, feature_num), dtype=jnp.float32)
    bound1 = 1.0 / jnp.sqrt(feature_num)
    w1 = jax.random.uniform(k1, (hidden, feature_num), jnp.float32, -bound1, bound1)
    b1 = jax.random.uniform(k2, (hidden,), jnp.float32, -bound1, bound1)
    bound2 = 1.0 / jnp.sqrt(hidden)
    w2 = jax.random.uniform(k3, (out_dim, hidden), jnp.float32, -bound2, bound2)
    b2 = jax.random.uniform(k4, (out_dim,), jnp.float32, -bound2, bound2)

    ref = _ref_forward(x, w1, b1, w2, b2)

    fwd = jax.jit(net_forward)

    # --- f32 weights (tolerance covers MXU f32-via-bf16-pass precision differences) ---
    params_f32 = prepare_params(w1, b1, w2, b2, dtype=jnp.float32)
    out_f32 = jax.block_until_ready(fwd(x, *params_f32))
    assert out_f32.shape == (batch, out_dim), out_f32.shape
    assert jnp.allclose(out_f32, ref, atol=2e-2, rtol=2e-2), "f32 mismatch vs reference"

    # --- bf16 weights/activations, f32 accumulation (v6e/v7x MXU fast path) ---
    params_bf16 = prepare_params(w1, b1, w2, b2, dtype=jnp.bfloat16)
    out_bf16 = jax.block_until_ready(fwd(x, *params_bf16))
    assert out_bf16.shape == (batch, out_dim), out_bf16.shape
    assert jnp.allclose(out_bf16, ref, atol=1e-1, rtol=1e-1), "bf16 mismatch vs reference"

    print("KERNEL_OK")
</pallas_src>

<mosaic_0001>
module attributes {stable_mosaic.version = 11 : i64} {
  func.func @_mlp_kernel(%arg0: i32, %arg1: memref<48x32xf32, #tpu.memory_space<vmem>>, %arg2: memref<32x512xf32, #tpu.memory_space<vmem>>, %arg3: memref<1x512xf32, #tpu.memory_space<vmem>>, %arg4: memref<512x20xf32, #tpu.memory_space<vmem>>, %arg5: memref<1x20xf32, #tpu.memory_space<vmem>>, %arg6: memref<48x20xf32, #tpu.memory_space<vmem>>) attributes {dimension_semantics = [#tpu.dimension_semantics<parallel>], iteration_bounds = array<i64: 2>, scalar_prefetch = 0 : i64, scratch_operands = 0 : i64, tpu.core_type = #tpu.core_type<tc>, window_params = [{transform_indices = @transform_0, window_bounds = array<i64: 48, 32>}, {pipeline_mode = #tpu.pipeline_mode<synchronous>, transform_indices = @transform_1, window_bounds = array<i64: 32, 512>}, {pipeline_mode = #tpu.pipeline_mode<synchronous>, transform_indices = @transform_2, window_bounds = array<i64: 1, 512>}, {pipeline_mode = #tpu.pipeline_mode<synchronous>, transform_indices = @transform_3, window_bounds = array<i64: 512, 20>}, {pipeline_mode = #tpu.pipeline_mode<synchronous>, transform_indices = @transform_4, window_bounds = array<i64: 1, 20>}, {transform_indices = @transform_5, window_bounds = array<i64: 48, 20>}]} {
    %c0 = arith.constant 0 : index
    %c0_0 = arith.constant 0 : index
    %0 = vector.load %arg1[%c0, %c0_0] : memref<48x32xf32, #tpu.memory_space<vmem>>, vector<48x32xf32>
    %c0_1 = arith.constant 0 : index
    %c0_2 = arith.constant 0 : index
    %1 = vector.load %arg2[%c0_1, %c0_2] : memref<32x512xf32, #tpu.memory_space<vmem>>, vector<32x512xf32>
    %cst = arith.constant dense<0.000000e+00> : vector<48x512xf32>
    %2 = tpu.matmul %0, %1, %cst {dimension_numbers = #tpu.dot_dimension_numbers<[1], [0], [0], [1], [0, 0, 1, 1], [], []>} : vector<48x32xf32>, vector<32x512xf32>, vector<48x512xf32> -> vector<48x512xf32>
    %c0_3 = arith.constant 0 : index
    %c0_4 = arith.constant 0 : index
    %3 = vector.load %arg3[%c0_3, %c0_4] : memref<1x512xf32, #tpu.memory_space<vmem>>, vector<1x512xf32>
    %4 = vector.broadcast %3 : vector<1x512xf32> to vector<48x512xf32>
    %5 = arith.addf %2, %4 : vector<48x512xf32>
    %cst_5 = arith.constant 0.000000e+00 : f32
    %6 = vector.broadcast %cst_5 : f32 to vector<48x512xf32>
    %7 = arith.maximumf %5, %6 : vector<48x512xf32>
    %c0_6 = arith.constant 0 : index
    %c0_7 = arith.constant 0 : index
    %8 = vector.load %arg4[%c0_6, %c0_7] : memref<512x20xf32, #tpu.memory_space<vmem>>, vector<512x20xf32>
    %cst_8 = arith.constant dense<0.000000e+00> : vector<48x20xf32>
    %9 = tpu.matmul %7, %8, %cst_8 {dimension_numbers = #tpu.dot_dimension_numbers<[1], [0], [0], [1], [0, 0, 1, 1], [], []>} : vector<48x512xf32>, vector<512x20xf32>, vector<48x20xf32> -> vector<48x20xf32>
    %c0_9 = arith.constant 0 : index
    %c0_10 = arith.constant 0 : index
    %10 = vector.load %arg5[%c0_9, %c0_10] : memref<1x20xf32, #tpu.memory_space<vmem>>, vector<1x20xf32>
    %11 = vector.broadcast %10 : vector<1x20xf32> to vector<48x20xf32>
    %12 = arith.addf %9, %11 : vector<48x20xf32>
    %c0_11 = arith.constant 0 : index
    %c0_12 = arith.constant 0 : index
    %13 = vector.load %arg6[%c0_11, %c0_12] : memref<48x20xf32, #tpu.memory_space<vmem>>, vector<48x20xf32>
    tpu.vector_store %arg6[%c0_11, %c0_12], %12 {strides = array<i32>} : memref<48x20xf32, #tpu.memory_space<vmem>>, vector<48x20xf32>,
    return
  }
  func.func @transform_0(%arg0: i32) -> (i32, i32) {
    %c0_i32 = arith.constant 0 : i32
    %c0_i32_0 = arith.constant 0 : i32
    return %arg0, %c0_i32 : i32, i32
  }
  func.func @transform_1(%arg0: i32) -> (i32, i32) {
    %c0_i32 = arith.constant 0 : i32
    %c0_i32_0 = arith.constant 0 : i32
    %c0_i32_1 = arith.constant 0 : i32
    return %c0_i32, %c0_i32_0 : i32, i32
  }
  func.func @transform_2(%arg0: i32) -> (i32, i32) {
    %c0_i32 = arith.constant 0 : i32
    %c0_i32_0 = arith.constant 0 : i32
    %c0_i32_1 = arith.constant 0 : i32
    return %c0_i32, %c0_i32_0 : i32, i32
  }
  func.func @transform_3(%arg0: i32) -> (i32, i32) {
    %c0_i32 = arith.constant 0 : i32
    %c0_i32_0 = arith.constant 0 : i32
    %c0_i32_1 = arith.constant 0 : i32
    return %c0_i32, %c0_i32_0 : i32, i32
  }
  func.func @transform_4(%arg0: i32) -> (i32, i32) {
    %c0_i32 = arith.constant 0 : i32
    %c0_i32_0 = arith.constant 0 : i32
    %c0_i32_1 = arith.constant 0 : i32
    return %c0_i32, %c0_i32_0 : i32, i32
  }
  func.func @transform_5(%arg0: i32) -> (i32, i32) {
    %c0_i32 = arith.constant 0 : i32
    %c0_i32_0 = arith.constant 0 : i32
    return %arg0, %c0_i32 : i32, i32
  }
}

</mosaic_0001>

<llo_original>
// kernel: net_forward.1
$region0: #{net_forward.1}
  #allocation0 [shape = 'u32[]', space=smem, size = 0x4, offset = 0x4, fixed_abs, tag = 'smem constant byte address 0x4 - core index']
  #allocation1 [shape = 'u32[72,128]{1,0:T(1,128)}', space=vmem, size = 0x9000, scoped, tag = 'internal scratch']
  %s0 = inlined_call_operand.vmem [shape: f32[72,32], index: 0, kind: input, shape index: {}]
  %s1 = inlined_call_operand.vmem [shape: f32[32,512], index: 1, kind: input, shape index: {}]
  %s2 = inlined_call_operand.vmem [shape: f32[1,512], index: 2, kind: input, shape index: {}]
  %s3 = inlined_call_operand.vmem [shape: f32[512,20], index: 3, kind: input, shape index: {}]
  %s4 = inlined_call_operand.vmem [shape: f32[1,20], index: 4, kind: input, shape index: {}]
  %s5 = inlined_call_operand.vmem [shape: f32[72,20], index: 5, kind: output, shape index: {}]
  %s6 = sld [smem:[#allocation0]]
  $region101: #{net_forward.1} parent=0
    _
  %s8 = ssub.s32 1, %s6
  %s9 = scalar_select 0, %s8, %s6
  $region1: #{net_forward.1} parent=0
    #allocation2 [shape = 'u8[49152]{0}', space=vmem, size = 0xc000, scoped, tag = 'output window, operand 0']
    loop: start=0, step=1, limit=4
    $region2: #{net_forward.1} parent=1 // loop_pre_header
      _
    $region3: #{net_forward.1} parent=1 // loop_header
      %s11 = sphi 0, %s15
      %p12 = scmp.ge.s32.totalorder %s11, 4
      %s21 = sphi 0, %s23
      %s24 = sphi 0, %s21
      %s25 = sphi 0, %s24
      %s41 = sphi 0, %s25
      %s45 = sphi 0, %s45
      %s47 = sphi 0, %s45
      %s48 = sphi 0, %s47
      %s62 = sphi 0, %s48
      %s66 = sphi 0, %s66
      %s68 = sphi 0, %s66
      %s69 = sphi 0, %s68
      %s83 = sphi 0, %s69
      %s87 = sphi 0, %s87
      %s89 = sphi 0, %s87
      %s90 = sphi 0, %s89
      %s104 = sphi 0, %s90
      %s108 = sphi 0, %s108
      %s110 = sphi 0, %s108
      %s111 = sphi 0, %s110
      %s125 = sphi 0, %s111
      %s131 = sphi 0, %s133
      %s134 = sphi 0, %s131
      %s135 = sphi 0, %s134
      %s151 = sphi 0, %s135
    $region4: #{net_forward.1} parent=1 // loop_header_branch
      %14 = sbr.rel (%p12) target = $region8
    $region5: #{net_forward.1} parent=1 // loop_body
      %s16 = ssub.s32 %s11, 1
      %s17 = ssub.s32 %s11, 2
      %s18 = sadd.s32 %s11, 1
      %s19 = ssub.s32 %s11, %s18
      %p20 = scmp.eq.s32.totalorder %s19, 0
      %s22 = sadd.s32 %s21, 1
      %s23 = scalar_select %p20, %s21, %s22
      %p26 = pneg %p20
      %p27 = scmp.eq.s32.totalorder %s11, 1
      %p28 = por %p26, %p27
      %p29 = scmp.ne.s32.totalorder %s21, %s24
      %p30 = scmp.eq.s32.totalorder %s11, 0
      %p31 = por %p29, %p30
      %p32 = scmp.ne.s32.totalorder %s21, %s24
      %p33 = scmp.eq.s32.totalorder %s16, 1
      %p34 = por %p32, %p33
      %p35 = scmp.ne.s32.totalorder %s24, %s25
      %p36 = scmp.eq.s32.totalorder %s16, 0
      %p37 = por %p35, %p36
      %p38 = scmp.ne.s32.totalorder %s24, %s25
      %p39 = scmp.eq.s32.totalorder %s17, 1
      %p40 = por %p38, %p39
      %p42 = scmp.ne.s32.totalorder %s25, %s41
      %p43 = scmp.eq.s32.totalorder %s17, 0
      %p44 = por %p42, %p43
      %s46 = sadd.s32 %s45, 1
      %p49 = scmp.eq.s32.totalorder %s11, 1
      %p50 = scmp.ne.s32.totalorder %s45, %s47
      %p51 = scmp.eq.s32.totalorder %s11, 0
      %p52 = por %p50, %p51
      %p53 = scmp.ne.s32.totalorder %s45, %s47
      %p54 = scmp.eq.s32.totalorder %s16, 1
      %p55 = por %p53, %p54
      %p56 = scmp.ne.s32.totalorder %s47, %s48
      %p57 = scmp.eq.s32.totalorder %s16, 0
      %p58 = por %p56, %p57
      %p59 = scmp.ne.s32.totalorder %s47, %s48
      %p60 = scmp.eq.s32.totalorder %s17, 1
      %p61 = por %p59, %p60
      %p63 = scmp.ne.s32.totalorder %s48, %s62
      %p64 = scmp.eq.s32.totalorder %s17, 0
      %p65 = por %p63, %p64
      %s67 = sadd.s32 %s66, 1
      %p70 = scmp.eq.s32.totalorder %s11, 1
      %p71 = scmp.ne.s32.totalorder %s66, %s68
      %p72 = scmp.eq.s32.totalorder %s11, 0
      %p73 = por %p71, %p72
      %p74 = scmp.ne.s32.totalorder %s66, %s68
      %p75 = scmp.eq.s32.totalorder %s16, 1
      %p76 = por %p74, %p75
      %p77 = scmp.ne.s32.totalorder %s68, %s69
      %p78 = scmp.eq.s32.totalorder %s16, 0
      %p79 = por %p77, %p78
      %p80 = scmp.ne.s32.totalorder %s68, %s69
      %p81 = scmp.eq.s32.totalorder %s17, 1
      %p82 = por %p80, %p81
      %p84 = scmp.ne.s32.totalorder %s69, %s83
      %p85 = scmp.eq.s32.totalorder %s17, 0
      %p86 = por %p84, %p85
      %s88 = sadd.s32 %s87, 1
      %p91 = scmp.eq.s32.totalorder %s11, 1
      %p92 = scmp.ne.s32.totalorder %s87, %s89
      %p93 = scmp.eq.s32.totalorder %s11, 0
      %p94 = por %p92, %p93
      %p95 = scmp.ne.s32.totalorder %s87, %s89
      %p96 = scmp.eq.s32.totalorder %s16, 1
      %p97 = por %p95, %p96
      %p98 = scmp.ne.s32.totalorder %s89, %s90
      %p99 = scmp.eq.s32.totalorder %s16, 0
      %p100 = por %p98, %p99
      %p101 = scmp.ne.s32.totalorder %s89, %s90
      %p102 = scmp.eq.s32.totalorder %s17, 1
      %p103 = por %p101, %p102
      %p105 = scmp.ne.s32.totalorder %s90, %s104
      %p106 = scmp.eq.s32.totalorder %s17, 0
      %p107 = por %p105, %p106
      %s109 = sadd.s32 %s108, 1
      %p112 = scmp.eq.s32.totalorder %s11, 1
      %p113 = scmp.ne.s32.totalorder %s108, %s110
      %p114 = scmp.eq.s32.totalorder %s11, 0
      %p115 = por %p113, %p114
      %p116 = scmp.ne.s32.totalorder %s108, %s110
      %p117 = scmp.eq.s32.totalorder %s16, 1
      %p118 = por %p116, %p117
      %p119 = scmp.ne.s32.totalorder %s110, %s111
      %p120 = scmp.eq.s32.totalorder %s16, 0
      %p121 = por %p119, %p120
      %p122 = scmp.ne.s32.totalorder %s110, %s111
      %p123 = scmp.eq.s32.totalorder %s17, 1
      %p124 = por %p122, %p123
      %p126 = scmp.ne.s32.totalorder %s111, %s125
      %p127 = scmp.eq.s32.totalorder %s17, 0
      %p128 = por %p126, %p127
      %s129 = ssub.s32 %s11, %s18
      %p130 = scmp.eq.s32.totalorder %s129, 0
      %s132 = sadd.s32 %s131, 1
      %s133 = scalar_select %p130, %s131, %s132
      %p136 = pneg %p130
      %p137 = scmp.eq.s32.totalorder %s11, 1
      %p138 = por %p136, %p137
      %p139 = scmp.ne.s32.totalorder %s131, %s134
      %p140 = scmp.eq.s32.totalorder %s11, 0
      %p141 = por %p139, %p140
      %p142 = scmp.ne.s32.totalorder %s131, %s134
      %p143 = scmp.eq.s32.totalorder %s16, 1
      %p144 = por %p142, %p143
      %p145 = scmp.ne.s32.totalorder %s134, %s135
      %p146 = scmp.eq.s32.totalorder %s16, 0
      %p147 = por %p145, %p146
      %p148 = scmp.ne.s32.totalorder %s134, %s135
      %p149 = scmp.eq.s32.totalorder %s17, 1
      %p150 = por %p148, %p149
      %p152 = scmp.ne.s32.totalorder %s135, %s151
      %p153 = scmp.eq.s32.totalorder %s17, 0
      %p154 = por %p152, %p153
      %p155 = scmp.le.s32.totalorder 1, %s11
      %p156 = scmp.lt.s32.totalorder %s11, 3
      %p157 = pnand %p155, %p156
      %p158 = pneg %p157
      // Predicated region
      $region9: #{net_forward.1} parent=5 // pred_check
        _
      $region10: #{net_forward.1} parent=5 // pred_check_branch
        %160 = sbr.rel (%p157) target = $region12
      $region11: #{net_forward.1} parent=5 // pred_region
        %s161 = ssub.s32 %s11, 1
        // Predicated region
        $region13: #{net_forward.1} parent=11 // pred_check
          %p162 = pneg %p58
        $region14: #{net_forward.1} parent=11 // pred_check_branch
          %164 = sbr.rel (%p162) target = $region16
        $region15: #{net_forward.1} parent=11 // pred_region
          _
        $region16: #{net_forward.1} parent=11 // pred_fallthru
          _
        // Predicated region
        $region17: #{net_forward.1} parent=11 // pred_check
          %p165 = pneg %p79
        $region18: #{net_forward.1} parent=11 // pred_check_branch
          %167 = sbr.rel (%p165) target = $region20
        $region19: #{net_forward.1} parent=11 // pred_region
          _
        $region20: #{net_forward.1} parent=11 // pred_fallthru
          _
        // Predicated region
        $region21: #{net_forward.1} parent=11 // pred_check
          %p168 = pneg %p100
        $region22: #{net_forward.1} parent=11 // pred_check_branch
          %170 = sbr.rel (%p168) target = $region24
        $region23: #{net_forward.1} parent=11 // pred_region
          _
        $region24: #{net_forward.1} parent=11 // pred_fallthru
          _
        // Predicated region
        $region25: #{net_forward.1} parent=11 // pred_check
          %p171 = pneg %p121
        $region26: #{net_forward.1} parent=11 // pred_check_branch
          %173 = sbr.rel (%p171) target = $region28
        $region27: #{net_forward.1} parent=11 // pred_region
          _
        $region28: #{net_forward.1} parent=11 // pred_fallthru
          _
      $region12: #{net_forward.1} parent=5 // pred_fallthru
        _
      %p174 = scmp.lt.s32.totalorder %s11, 2
      // Predicated region
      $region29: #{net_forward.1} parent=5 // pred_check
        %p175 = pneg %p174
      $region30: #{net_forward.1} parent=5 // pred_check_branch
        %177 = sbr.rel (%p175) target = $region32
      $region31: #{net_forward.1} parent=5 // pred_region
        // Predicated region
        $region33: #{net_forward.1} parent=31 // pred_check
          %p178 = pneg %p31
        $region34: #{net_forward.1} parent=31 // pred_check_branch
          %180 = sbr.rel (%p178) target = $region36
        $region35: #{net_forward.1} parent=31 // pred_region
          %s181 = smul.u32 6, %s11
          %s182 = ssub.s32 9, %s181
          %p183 = scmp.lt.s32.totalorder %s182, 6
          %s184 = scalar_select %p183, %s182, 6
          %s185 = smul.u32 8, %s184
          %p186 = scmp.lt.s32.totalorder %s181, 8
          %s187 = scalar_select %p186, %s181, 8
          %s188 = smul.addr %s187, 8
          %s189 = scalar_lea.vmem %s0, %s188
          %s190 = smul.u32 6, %s11
          %s191 = ssub.s32 9, %s190
          %p192 = scmp.lt.s32.totalorder %s191, 6
          %s193 = scalar_select %p192, %s191, 6
          %s194 = smul.u32 8, %s193
        $region36: #{net_forward.1} parent=31 // pred_fallthru
          _
      $region32: #{net_forward.1} parent=5 // pred_fallthru
        _
      %p195 = scmp.le.s32.totalorder 1, %s11
      %p196 = scmp.lt.s32.totalorder %s11, 3
      %p197 = pnand %p195, %p196
      %p198 = pneg %p197
      // Predicated region
      $region37: #{net_forward.1} parent=5 // pred_check
        _
      $region38: #{net_forward.1} parent=5 // pred_check_branch
        %200 = sbr.rel (%p197) target = $region40
      $region39: #{net_forward.1} parent=5 // pred_region
        %s201 = ssub.s32 %s11, 1
        %s202 = smul.u32 6, %s16
        %s203 = ssub.s32 9, %s202
        %p204 = scmp.lt.s32.totalorder %s203, 6
        %s205 = scalar_select %p204, %s203, 6
        %s206 = smul.u32 8, %s205
        %p207 = scmp.lt.s32.totalorder %s202, 8
        %s208 = scalar_select %p207, %s202, 8
        %s209 = smul.addr %s208, 8
        %s210 = scalar_lea.vmem %s0, %s209
        %p211 = pneg %p37
        %p212 = pneg %p34
        %p213 = pneg %p58
        %p214 = pneg %p55
        %p215 = pneg %p79
        %p216 = pneg %p76
        %p217 = pneg %p100
        %p218 = pneg %p97
        %p219 = pneg %p121
        %p220 = pneg %p118
        %p221 = pneg %p147
        %p222 = pneg %p144
        %s223 = sand.u32 %s134, 1
        %s224 = sand.u32 %s134, 1
        %s225 = smul.addr %s224, 48
        %s226 = scalar_lea.vmem [#allocation2], %s225
        %s227 = smul.u32 6, %s16
        %s228 = ssub.s32 9, %s227
        %p229 = scmp.lt.s32.totalorder %s228, 6
        %s230 = scalar_select %p229, %s228, 6
        %s231 = smul.u32 8, %s230
        %p232 = scmp.lt.s32.totalorder %s227, 8
        %s233 = scalar_select %p232, %s227, 8
        %s234 = smul.addr %s233, 8
        %s235 = scalar_lea.vmem %s0, %s234
        %s236 = smul.u32 6, %s16
        %s237 = ssub.s32 9, %s236
        %p238 = scmp.lt.s32.totalorder %s237, 6
        %s239 = scalar_select %p238, %s237, 6
        %s240 = smul.u32 8, %s239
        %s241 = smul.u32 6, %s16
        %s242 = ssub.s32 9, %s241
        %p243 = scmp.lt.s32.totalorder %s242, 6
        %s244 = scalar_select %p243, %s242, 6
        %s245 = smul.u32 8, %s244
        %v246 = vld [vmem:[%s235] sm:$0xff]
        %v247 = vld [vmem:[%s235 + $0x8] sm:$0xff]
        %v248 = vld [vmem:[%s235 + $0x10] sm:$0xff]
        %v249 = vld [vmem:[%s235 + $0x18] sm:$0xff]
        %v250 = vld [vmem:[%s235 + $0x20] sm:$0xff]
        %v251 = vld [vmem:[%s235 + $0x28] sm:$0xff]
        %v252 = vld [vmem:[%s1] sm:$0xff]
        %v253 = vld [vmem:[%s1 + $0x8] sm:$0xff]
        %v254 = vld [vmem:[%s1 + $0x10] sm:$0xff]
        %v255 = vld [vmem:[%s1 + $0x18] sm:$0xff]
        %v256 = vld [vmem:[%s1 + $0x20] sm:$0xff]
        %v257 = vld [vmem:[%s1 + $0x28] sm:$0xff]
        %v258 = vld [vmem:[%s1 + $0x30] sm:$0xff]
        %v259 = vld [vmem:[%s1 + $0x38] sm:$0xff]
        %v260 = vld [vmem:[%s1 + $0x40] sm:$0xff]
        %v261 = vld [vmem:[%s1 + $0x48] sm:$0xff]
        %v262 = vld [vmem:[%s1 + $0x50] sm:$0xff]
        %v263 = vld [vmem:[%s1 + $0x58] sm:$0xff]
        %v264 = vld [vmem:[%s1 + $0x60] sm:$0xff]
        %v265 = vld [vmem:[%s1 + $0x68] sm:$0xff]
        %v266 = vld [vmem:[%s1 + $0x70] sm:$0xff]
        %v267 = vld [vmem:[%s1 + $0x78] sm:$0xff]
        %v268 = vld [vmem:[%s2] sm:$0xf]
        %v270 = vperm.slane %v268, 0
        %v271 = vperm.slane %v268, 1
        %v272 = vperm.slane %v268, 2
        %v273 = vperm.slane %v268, 3
        %vm278 = vcmask 261120
        %v280 = vsel %vm278, %v246, 0
        %v283 = vsel %vm278, %v247, 0
        %v286 = vsel %vm278, %v248, 0
        %v289 = vsel %vm278, %v249, 0
        %v292 = vsel %vm278, %v250, 0
        %v295 = vsel %vm278, %v251, 0
        %297 = vmatpush.msra.mxu0 0.0
        %298 = vmatpush.msra.mxu0 0.0
        %299 = vmatpush.msra.mxu0 0.0
        %300 = vmatpush.msra.mxu0 0.0
        %301 = vmatpush.msra.mxu0 0.0
        %302 = vmatpush.msra.mxu0 0.0
        %303 = vmatpush.msra.mxu0 0.0
        %304 = vmatpush.msra.mxu0 0.0
        %305 = vmatpush.msra.mxu0 0.0
        %306 = vmatpush.msra.mxu0 0.0
        %307 = vmatpush.msra.mxu0 0.0
        %308 = vmatpush.msra.mxu0 0.0
        %309 = vmatpush.msra.mxu0 %v264
        %310 = vmatpush.msra.mxu0 %v260
        %311 = vmatpush.msra.mxu0 %v256
        %312 = vmatpush.msra.mxu0 %v252
        %313 = vmatmul.f32.gmra.mxu0 %v280
        %v314 = vpop.f32.mrf.mxu0
        %v315 = vadd.f32 %v270, %v314
        %316 = vmatmul.f32.gmra.mxu0 %v283
        %v317 = vpop.f32.mrf.mxu0
        %v318 = vadd.f32 %v270, %v317
        %319 = vmatmul.f32.gmra.mxu0 %v286
        %v320 = vpop.f32.mrf.mxu0
        %v321 = vadd.f32 %v270, %v320
        %322 = vmatmul.f32.gmra.mxu0 %v289
        %v323 = vpop.f32.mrf.mxu0
        %v324 = vadd.f32 %v270, %v323
        %325 = vmatmul.f32.gmra.mxu0 %v292
        %v326 = vpop.f32.mrf.mxu0
        %v327 = vadd.f32 %v270, %v326
        %328 = vmatmul.f32.gmra.mxu0 %v295
        %v329 = vpop.f32.mrf.mxu0
        %v330 = vadd.f32 %v270, %v329
        %331 = vdwg.mxu0
        %332 = vmatpush.msra.mxu0 0.0
        %333 = vmatpush.msra.mxu0 0.0
        %334 = vmatpush.msra.mxu0 0.0
        %335 = vmatpush.msra.mxu0 0.0
        %336 = vmatpush.msra.mxu0 0.0
        %337 = vmatpush.msra.mxu0 0.0
        %338 = vmatpush.msra.mxu0 0.0
        %339 = vmatpush.msra.mxu0 0.0
        %340 = vmatpush.msra.mxu0 0.0
        %341 = vmatpush.msra.mxu0 0.0
        %342 = vmatpush.msra.mxu0 0.0
        %343 = vmatpush.msra.mxu0 0.0
        %344 = vmatpush.msra.mxu0 %v265
        %345 = vmatpush.msra.mxu0 %v261
        %346 = vmatpush.msra.mxu0 %v257
        %347 = vmatpush.msra.mxu0 %v253
        %348 = vmatmul.f32.gmra.mxu0 %v280
        %v349 = vpop.f32.mrf.mxu0
        %v350 = vadd.f32 %v271, %v349
        %351 = vmatmul.f32.gmra.mxu0 %v283
        %v352 = vpop.f32.mrf.mxu0
        %v353 = vadd.f32 %v271, %v352
        %354 = vmatmul.f32.gmra.mxu0 %v286
        %v355 = vpop.f32.mrf.mxu0
        %v356 = vadd.f32 %v271, %v355
        %357 = vmatmul.f32.gmra.mxu0 %v289
        %v358 = vpop.f32.mrf.mxu0
        %v359 = vadd.f32 %v271, %v358
        %360 = vmatmul.f32.gmra.mxu0 %v292
        %v361 = vpop.f32.mrf.mxu0
        %v362 = vadd.f32 %v271, %v361
        %363 = vmatmul.f32.gmra.mxu0 %v295
        %v364 = vpop.f32.mrf.mxu0
        %v365 = vadd.f32 %v271, %v364
        %366 = vdwg.mxu0
        %367 = vmatpush.msra.mxu0 0.0
        %368 = vmatpush.msra.mxu0 0.0
        %369 = vmatpush.msra.mxu0 0.0
        %370 = vmatpush.msra.mxu0 0.0
        %371 = vmatpush.msra.mxu0 0.0
        %372 = vmatpush.msra.mxu0 0.0
        %373 = vmatpush.msra.mxu0 0.0
        %374 = vmatpush.msra.mxu0 0.0
        %375 = vmatpush.msra.mxu0 0.0
        %376 = vmatpush.msra.mxu0 0.0
        %377 = vmatpush.msra.mxu0 0.0
        %378 = vmatpush.msra.mxu0 0.0
        %379 = vmatpush.msra.mxu0 %v266
        %380 = vmatpush.msra.mxu0 %v262
        %381 = vmatpush.msra.mxu0 %v258
        %382 = vmatpush.msra.mxu0 %v254
        %383 = vmatmul.f32.gmra.mxu0 %v280
        %v384 = vpop.f32.mrf.mxu0
        %v385 = vadd.f32 %v272, %v384
        %386 = vmatmul.f32.gmra.mxu0 %v283
        %v387 = vpop.f32.mrf.mxu0
        %v388 = vadd.f32 %v272, %v387
        %389 = vmatmul.f32.gmra.mxu0 %v286
        %v390 = vpop.f32.mrf.mxu0
        %v391 = vadd.f32 %v272, %v390
        %392 = vmatmul.f32.gmra.mxu0 %v289
        %v393 = vpop.f32.mrf.mxu0
        %v394 = vadd.f32 %v272, %v393
        %395 = vmatmul.f32.gmra.mxu0 %v292
        %v396 = vpop.f32.mrf.mxu0
        %v397 = vadd.f32 %v272, %v396
        %398 = vmatmul.f32.gmra.mxu0 %v295
        %v399 = vpop.f32.mrf.mxu0
        %v400 = vadd.f32 %v272, %v399
        %401 = vdwg.mxu0
        %402 = vmatpush.msra.mxu0 0.0
        %403 = vmatpush.msra.mxu0 0.0
        %404 = vmatpush.msra.mxu0 0.0
        %405 = vmatpush.msra.mxu0 0.0
        %406 = vmatpush.msra.mxu0 0.0
        %407 = vmatpush.msra.mxu0 0.0
        %408 = vmatpush.msra.mxu0 0.0
        %409 = vmatpush.msra.mxu0 0.0
        %410 = vmatpush.msra.mxu0 0.0
        %411 = vmatpush.msra.mxu0 0.0
        %412 = vmatpush.msra.mxu0 0.0
        %413 = vmatpush.msra.mxu0 0.0
        %414 = vmatpush.msra.mxu0 %v267
        %415 = vmatpush.msra.mxu0 %v263
        %416 = vmatpush.msra.mxu0 %v259
        %417 = vmatpush.msra.mxu0 %v255
        %418 = vmatmul.f32.gmra.mxu0 %v280
        %v419 = vpop.f32.mrf.mxu0
        %v420 = vadd.f32 %v273, %v419
        %421 = vmatmul.f32.gmra.mxu0 %v283
        %v422 = vpop.f32.mrf.mxu0
        %v423 = vadd.f32 %v273, %v422
        %424 = vmatmul.f32.gmra.mxu0 %v286
        %v425 = vpop.f32.mrf.mxu0
        %v426 = vadd.f32 %v273, %v425
        %427 = vmatmul.f32.gmra.mxu0 %v289
        %v428 = vpop.f32.mrf.mxu0
        %v429 = vadd.f32 %v273, %v428
        %430 = vmatmul.f32.gmra.mxu0 %v292
        %v431 = vpop.f32.mrf.mxu0
        %v432 = vadd.f32 %v273, %v431
        %433 = vmatmul.f32.gmra.mxu0 %v295
        %v434 = vpop.f32.mrf.mxu0
        %v435 = vadd.f32 %v273, %v434
        %436 = vdwg.mxu0
        %v437 = vmax.f32 %v315, 0.0
        %v438 = vmax.f32 %v350, 0.0
        %v439 = vmax.f32 %v385, 0.0
        %v440 = vmax.f32 %v420, 0.0
        %v441 = vmax.f32 %v318, 0.0
        %v442 = vmax.f32 %v353, 0.0
        %v443 = vmax.f32 %v388, 0.0
        %v444 = vmax.f32 %v423, 0.0
        %v445 = vmax.f32 %v321, 0.0
        %v446 = vmax.f32 %v356, 0.0
        %v447 = vmax.f32 %v391, 0.0
        %v448 = vmax.f32 %v426, 0.0
        %v449 = vmax.f32 %v324, 0.0
        %v450 = vmax.f32 %v359, 0.0
        %v451 = vmax.f32 %v394, 0.0
        %v452 = vmax.f32 %v429, 0.0
        %v453 = vmax.f32 %v327, 0.0
        %v454 = vmax.f32 %v362, 0.0
        %v455 = vmax.f32 %v397, 0.0
        %v456 = vmax.f32 %v432, 0.0
        %v457 = vmax.f32 %v330, 0.0
        %v458 = vmax.f32 %v365, 0.0
        %v459 = vmax.f32 %v400, 0.0
        %v460 = vmax.f32 %v435, 0.0
        %v461 = vld [vmem:[%s3] sm:$0xff]
        %v462 = vld [vmem:[%s3 + $0x8] sm:$0xff]
        %v463 = vld [vmem:[%s3 + $0x10] sm:$0xff]
        %v464 = vld [vmem:[%s3 + $0x18] sm:$0xff]
        %v465 = vld [vmem:[%s3 + $0x20] sm:$0xff]
        %v466 = vld [vmem:[%s3 + $0x28] sm:$0xff]
        %v467 = vld [vmem:[%s3 + $0x30] sm:$0xff]
        %v468 = vld [vmem:[%s3 + $0x38] sm:$0xff]
        %v469 = vld [vmem:[%s3 + $0x40] sm:$0xff]
        %v470 = vld [vmem:[%s3 + $0x48] sm:$0xff]
        %v471 = vld [vmem:[%s3 + $0x50] sm:$0xff]
        %v472 = vld [vmem:[%s3 + $0x58] sm:$0xff]
        %v473 = vld [vmem:[%s3 + $0x60] sm:$0xff]
        %v474 = vld [vmem:[%s3 + $0x68] sm:$0xff]
        %v475 = vld [vmem:[%s3 + $0x70] sm:$0xff]
        %v476 = vld [vmem:[%s3 + $0x78] sm:$0xff]
        %v477 = vld [vmem:[%s3 + $0x80] sm:$0xff]
        %v478 = vld [vmem:[%s3 + $0x88] sm:$0xff]
        %v479 = vld [vmem:[%s3 + $0x90] sm:$0xff]
        %v480 = vld [vmem:[%s3 + $0x98] sm:$0xff]
        %v481 = vld [vmem:[%s3 + $0xa0] sm:$0xff]
        %v482 = vld [vmem:[%s3 + $0xa8] sm:$0xff]
        %v483 = vld [vmem:[%s3 + $0xb0] sm:$0xff]
        %v484 = vld [vmem:[%s3 + $0xb8] sm:$0xff]
        %v485 = vld [vmem:[%s3 + $0xc0] sm:$0xff]
        %v486 = vld [vmem:[%s3 + $0xc8] sm:$0xff]
        %v487 = vld [vmem:[%s3 + $0xd0] sm:$0xff]
        %v488 = vld [vmem:[%s3 + $0xd8] sm:$0xff]
        %v489 = vld [vmem:[%s3 + $0xe0] sm:$0xff]
        %v490 = vld [vmem:[%s3 + $0xe8] sm:$0xff]
        %v491 = vld [vmem:[%s3 + $0xf0] sm:$0xff]
        %v492 = vld [vmem:[%s3 + $0xf8] sm:$0xff]
        %v493 = vld [vmem:[%s3 + $0x100] sm:$0xff]
        %v494 = vld [vmem:[%s3 + $0x108] sm:$0xff]
        %v495 = vld [vmem:[%s3 + $0x110] sm:$0xff]
        %v496 = vld [vmem:[%s3 + $0x118] sm:$0xff]
        %v497 = vld [vmem:[%s3 + $0x120] sm:$0xff]
        %v498 = vld [vmem:[%s3 + $0x128] sm:$0xff]
        %v499 = vld [vmem:[%s3 + $0x130] sm:$0xff]
        %v500 = vld [vmem:[%s3 + $0x138] sm:$0xff]
        %v501 = vld [vmem:[%s3 + $0x140] sm:$0xff]
        %v502 = vld [vmem:[%s3 + $0x148] sm:$0xff]
        %v503 = vld [vmem:[%s3 + $0x150] sm:$0xff]
        %v504 = vld [vmem:[%s3 + $0x158] sm:$0xff]
        %v505 = vld [vmem:[%s3 + $0x160] sm:$0xff]
        %v506 = vld [vmem:[%s3 + $0x168] sm:$0xff]
        %v507 = vld [vmem:[%s3 + $0x170] sm:$0xff]
        %v508 = vld [vmem:[%s3 + $0x178] sm:$0xff]
        %v509 = vld [vmem:[%s3 + $0x180] sm:$0xff]
        %v510 = vld [vmem:[%s3 + $0x188] sm:$0xff]
        %v511 = vld [vmem:[%s3 + $0x190] sm:$0xff]
        %v512 = vld [vmem:[%s3 + $0x198] sm:$0xff]
        %v513 = vld [vmem:[%s3 + $0x1a0] sm:$0xff]
        %v514 = vld [vmem:[%s3 + $0x1a8] sm:$0xff]
        %v515 = vld [vmem:[%s3 + $0x1b0] sm:$0xff]
        %v516 = vld [vmem:[%s3 + $0x1b8] sm:$0xff]
        %v517 = vld [vmem:[%s3 + $0x1c0] sm:$0xff]
        %v518 = vld [vmem:[%s3 + $0x1c8] sm:$0xff]
        %v519 = vld [vmem:[%s3 + $0x1d0] sm:$0xff]
        %v520 = vld [vmem:[%s3 + $0x1d8] sm:$0xff]
        %v521 = vld [vmem:[%s3 + $0x1e0] sm:$0xff]
        %v522 = vld [vmem:[%s3 + $0x1e8] sm:$0xff]
        %v523 = vld [vmem:[%s3 + $0x1f0] sm:$0xff]
        %v524 = vld [vmem:[%s3 + $0x1f8] sm:$0xff]
        %v525 = vld [vmem:[%s4] sm:$0x1]
        %v527 = vperm.slane %v525, 0
        %529 = vmatpush.msra.mxu0 %v476
        %530 = vmatpush.msra.mxu0 %v475
        %531 = vmatpush.msra.mxu0 %v474
        %532 = vmatpush.msra.mxu0 %v473
        %533 = vmatpush.msra.mxu0 %v472
        %534 = vmatpush.msra.mxu0 %v471
        %535 = vmatpush.msra.mxu0 %v470
        %536 = vmatpush.msra.mxu0 %v469
        %537 = vmatpush.msra.mxu0 %v468
        %538 = vmatpush.msra.mxu0 %v467
        %539 = vmatpush.msra.mxu0 %v466
        %540 = vmatpush.msra.mxu0 %v465
        %541 = vmatpush.msra.mxu0 %v464
        %542 = vmatpush.msra.mxu0 %v463
        %543 = vmatpush.msra.mxu0 %v462
        %544 = vmatpush.msra.mxu0 %v461
        %545 = vmatmul.f32.gmra.mxu0 %v437
        %v546 = vpop.f32.mrf.mxu0
        %v547 = vadd.f32 %v527, %v546
        %548 = vmatmul.f32.gmra.mxu0 %v441
        %v549 = vpop.f32.mrf.mxu0
        %v550 = vadd.f32 %v527, %v549
        %551 = vmatmul.f32.gmra.mxu0 %v445
        %v552 = vpop.f32.mrf.mxu0
        %v553 = vadd.f32 %v527, %v552
        %554 = vmatmul.f32.gmra.mxu0 %v449
        %v555 = vpop.f32.mrf.mxu0
        %v556 = vadd.f32 %v527, %v555
        %557 = vmatmul.f32.gmra.mxu0 %v453
        %v558 = vpop.f32.mrf.mxu0
        %v559 = vadd.f32 %v527, %v558
        %560 = vmatmul.f32.gmra.mxu0 %v457
        %v561 = vpop.f32.mrf.mxu0
        %v562 = vadd.f32 %v527, %v561
        %563 = vdwg.mxu0
        %564 = vmatpush.msra.mxu0 %v492
        %565 = vmatpush.msra.mxu0 %v491
        %566 = vmatpush.msra.mxu0 %v490
        %567 = vmatpush.msra.mxu0 %v489
        %568 = vmatpush.msra.mxu0 %v488
        %569 = vmatpush.msra.mxu0 %v487
        %570 = vmatpush.msra.mxu0 %v486
        %571 = vmatpush.msra.mxu0 %v485
        %572 = vmatpush.msra.mxu0 %v484
        %573 = vmatpush.msra.mxu0 %v483
        %574 = vmatpush.msra.mxu0 %v482
        %575 = vmatpush.msra.mxu0 %v481
        %576 = vmatpush.msra.mxu0 %v480
        %577 = vmatpush.msra.mxu0 %v479
        %578 = vmatpush.msra.mxu0 %v478
        %579 = vmatpush.msra.mxu0 %v477
        %580 = vmatmul.f32.gmra.mxu0 %v438
        %v581 = vpop.f32.mrf.mxu0
        %v582 = vadd.f32 %v547, %v581
        %583 = vmatmul.f32.gmra.mxu0 %v442
        %v584 = vpop.f32.mrf.mxu0
        %v585 = vadd.f32 %v550, %v584
        %586 = vmatmul.f32.gmra.mxu0 %v446
        %v587 = vpop.f32.mrf.mxu0
        %v588 = vadd.f32 %v553, %v587
        %589 = vmatmul.f32.gmra.mxu0 %v450
        %v590 = vpop.f32.mrf.mxu0
        %v591 = vadd.f32 %v556, %v590
        %592 = vmatmul.f32.gmra.mxu0 %v454
        %v593 = vpop.f32.mrf.mxu0
        %v594 = vadd.f32 %v559, %v593
        %595 = vmatmul.f32.gmra.mxu0 %v458
        %v596 = vpop.f32.mrf.mxu0
        %v597 = vadd.f32 %v562, %v596
        %598 = vdwg.mxu0
        %599 = vmatpush.msra.mxu0 %v508
        %600 = vmatpush.msra.mxu0 %v507
        %601 = vmatpush.msra.mxu0 %v506
        %602 = vmatpush.msra.mxu0 %v505
        %603 = vmatpush.msra.mxu0 %v504
        %604 = vmatpush.msra.mxu0 %v503
        %605 = vmatpush.msra.mxu0 %v502
        %606 = vmatpush.msra.mxu0 %v501
        %607 = vmatpush.msra.mxu0 %v500
        %608 = vmatpush.msra.mxu0 %v499
        %609 = vmatpush.msra.mxu0 %v498
        %610 = vmatpush.msra.mxu0 %v497
        %611 = vmatpush.msra.mxu0 %v496
        %612 = vmatpush.msra.mxu0 %v495
        %613 = vmatpush.msra.mxu0 %v494
        %614 = vmatpush.msra.mxu0 %v493
        %615 = vmatmul.f32.gmra.mxu0 %v439
        %v616 = vpop.f32.mrf.mxu0
        %v617 = vadd.f32 %v582, %v616
        %618 = vmatmul.f32.gmra.mxu0 %v443
        %v619 = vpop.f32.mrf.mxu0
        %v620 = vadd.f32 %v585, %v619
        %621 = vmatmul.f32.gmra.mxu0 %v447
        %v622 = vpop.f32.mrf.mxu0
        %v623 = vadd.f32 %v588, %v622
        %624 = vmatmul.f32.gmra.mxu0 %v451
        %v625 = vpop.f32.mrf.mxu0
        %v626 = vadd.f32 %v591, %v625
        %627 = vmatmul.f32.gmra.mxu0 %v455
        %v628 = vpop.f32.mrf.mxu0
        %v629 = vadd.f32 %v594, %v628
        %630 = vmatmul.f32.gmra.mxu0 %v459
        %v631 = vpop.f32.mrf.mxu0
        %v632 = vadd.f32 %v597, %v631
        %633 = vdwg.mxu0
        %634 = vmatpush.msra.mxu0 %v524
        %635 = vmatpush.msra.mxu0 %v523
        %636 = vmatpush.msra.mxu0 %v522
        %637 = vmatpush.msra.mxu0 %v521
        %638 = vmatpush.msra.mxu0 %v520
        %639 = vmatpush.msra.mxu0 %v519
        %640 = vmatpush.msra.mxu0 %v518
        %641 = vmatpush.msra.mxu0 %v517
        %642 = vmatpush.msra.mxu0 %v516
        %643 = vmatpush.msra.mxu0 %v515
        %644 = vmatpush.msra.mxu0 %v514
        %645 = vmatpush.msra.mxu0 %v513
        %646 = vmatpush.msra.mxu0 %v512
        %647 = vmatpush.msra.mxu0 %v511
        %648 = vmatpush.msra.mxu0 %v510
        %649 = vmatpush.msra.mxu0 %v509
        %650 = vmatmul.f32.gmra.mxu0 %v440
        %v651 = vpop.f32.mrf.mxu0
        %v652 = vadd.f32 %v617, %v651
        %653 = vmatmul.f32.gmra.mxu0 %v444
        %v654 = vpop.f32.mrf.mxu0
        %v655 = vadd.f32 %v620, %v654
        %656 = vmatmul.f32.gmra.mxu0 %v448
        %v657 = vpop.f32.mrf.mxu0
        %v658 = vadd.f32 %v623, %v657
        %659 = vmatmul.f32.gmra.mxu0 %v452
        %v660 = vpop.f32.mrf.mxu0
        %v661 = vadd.f32 %v626, %v660
        %662 = vmatmul.f32.gmra.mxu0 %v456
        %v663 = vpop.f32.mrf.mxu0
        %v664 = vadd.f32 %v629, %v663
        %665 = vmatmul.f32.gmra.mxu0 %v460
        %v666 = vpop.f32.mrf.mxu0
        %v667 = vadd.f32 %v632, %v666
        %668 = vdwg.mxu0
        %vm669 = vcmask 162816
        %670 = vst.msk [vmem:[%s226] sm:$0xff] %vm669, %v652
        %671 = vst.msk [vmem:[%s226 + $0x8] sm:$0xff] %vm669, %v655
        %672 = vst.msk [vmem:[%s226 + $0x10] sm:$0xff] %vm669, %v658
        %673 = vst.msk [vmem:[%s226 + $0x18] sm:$0xff] %vm669, %v661
        %674 = vst.msk [vmem:[%s226 + $0x20] sm:$0xff] %vm669, %v664
        %675 = vst.msk [vmem:[%s226 + $0x28] sm:$0xff] %vm669, %v667
        %s676 = sand.u32 %s134, 1
        %s677 = sand.u32 %s134, 1
        %s678 = smul.addr %s677, 48
        %s679 = scalar_lea.vmem [#allocation2], %s678
        // Predicated region
        $region41: #{net_forward.1} parent=39 // pred_check
          %p680 = pneg %p144
        $region42: #{net_forward.1} parent=39 // pred_check_branch
          %682 = sbr.rel (%p680) target = $region44
        $region43: #{net_forward.1} parent=39 // pred_region
          %s683 = smul.u32 6, %s16
          %s684 = ssub.s32 9, %s683
          %p685 = scmp.lt.s32.totalorder %s684, 6
          %s686 = scalar_select %p685, %s684, 6
          %s687 = smul.u32 8, %s686
          %p688 = scmp.ne.s32.totalorder 0, %s687
          %s689 = smul.addr %s683, 8
          %s690 = scalar_lea.vmem %s5, %s689
          // Predicated region
          $region45: #{net_forward.1} parent=43 // pred_check
            %p691 = pneg %p688
          $region46: #{net_forward.1} parent=43 // pred_check_branch
            %693 = sbr.rel (%p691) target = $region48
          $region47: #{net_forward.1} parent=43 // pred_region
            // Predicated region
            $region49: #{net_forward.1} parent=47 // pred_check
              _
            $region50: #{net_forward.1} parent=47 // pred_check_branch
              %695 = sbr.rel (0) target = $region52
            $region51: #{net_forward.1} parent=47 // pred_region
              // Predicated region
              $region71: #{net_forward.1} parent=51 // pred_check
                _
              $region72: #{net_forward.1} parent=51 // pred_check_branch
                %756 = sbr.rel (0) target = $region74
              $region73: #{net_forward.1} parent=51 // pred_region
                %s757 = sdiv.u32.pop %s686, 6
                %s758 = srem.u32.pop %s686, 6
                // While loop
                $region75: #{net_forward.1} parent=73 // loop_pre_header
                  _
                $region76: #{net_forward.1} parent=73 // loop_header
                  %s760 = sphi 0, %s762
                  %p761 = scmp.ge.s32.totalorder %s760, %s757
                  %s765 = sphi 0, %s782
                  %s766 = sphi %s679, %s785
                  %s767 = sphi %s690, %s786
                $region77: #{net_forward.1} parent=73 // loop_header_branch
                  %764 = sbr.rel (%p761) target = $region81
                $region78: #{net_forward.1} parent=73 // loop_body
                  %v768 = vld [vmem:[%s766] sm:$0xff]
                  %769 = vst [vmem:[%s767] sm:$0xff] %v768
                  %v770 = vld [vmem:[%s766 + $0x8] sm:$0xff]
                  %771 = vst [vmem:[%s767 + $0x8] sm:$0xff] %v770
                  %v772 = vld [vmem:[%s766 + $0x10] sm:$0xff]
                  %773 = vst [vmem:[%s767 + $0x10] sm:$0xff] %v772
                  %v774 = vld [vmem:[%s766 + $0x18] sm:$0xff]
                  %775 = vst [vmem:[%s767 + $0x18] sm:$0xff] %v774
                  %v776 = vld [vmem:[%s766 + $0x20] sm:$0xff]
                  %777 = vst [vmem:[%s767 + $0x20] sm:$0xff] %v776
                  %v778 = vld [vmem:[%s766 + $0x28] sm:$0xff]
                  %779 = vst [vmem:[%s767 + $0x28] sm:$0xff] %v778
                  %s780 = sadd.s32 1, %s765
                  %p781 = scmp.ge.s32.totalorder %s780, %s757
                  %s782 = scalar_select %p781, 0, %s780
                  %s783 = smul.u32 %s782, 48
                  %s784 = smul.u32 %s782, 48
                  %s785 = scalar_lea.vmem %s679, %s783 [#allocation2]
                  %s786 = scalar_lea.vmem %s690, %s784
                $region79: #{net_forward.1} parent=73 // loop_footer
                  %s762 = sadd.s32 %s760, 1
                $region80: #{net_forward.1} parent=73 // loop_footer_branch
                  %759 = sbr.rel target = $region76
                $region81: #{net_forward.1} parent=73 // loop_exit
                  _
                %s787 = sdiv.u32.pop %s686, 6
                %s788 = srem.u32.pop %s686, 6
                %s789 = smul.u32 %s787, 6
                %s790 = smul.u32 8, %s789
                %s791 = scalar_lea.vmem %s679, %s790 [#allocation2]
                %s792 = smul.u32 8, %s789
                %s793 = scalar_lea.vmem %s690, %s792
                // While loop
                $region82: #{net_forward.1} parent=73 // loop_pre_header
                  _
                $region83: #{net_forward.1} parent=73 // loop_header
                  %s795 = sphi 0, %s797
                  %p796 = scmp.ge.s32.totalorder %s795, %s788
                  %s800 = sphi 0, %s807
                  %s801 = sphi %s791, %s810
                  %s802 = sphi %s793, %s811
                $region84: #{net_forward.1} parent=73 // loop_header_branch
                  %799 = sbr.rel (%p796) target = $region88
                $region85: #{net_forward.1} parent=73 // loop_body
                  %v803 = vld [vmem:[%s801] sm:$0xff]
                  %804 = vst [vmem:[%s802] sm:$0xff] %v803
                  %s805 = sadd.s32 1, %s800
                  %p806 = scmp.ge.s32.totalorder %s805, %s788
                  %s807 = scalar_select %p806, 0, %s805
                  %s808 = smul.u32 %s807, 8
                  %s809 = smul.u32 %s807, 8
                  %s810 = scalar_lea.vmem %s791, %s808 [#allocation2]
                  %s811 = scalar_lea.vmem %s793, %s809
                $region86: #{net_forward.1} parent=73 // loop_footer
                  %s797 = sadd.s32 %s795, 1
                $region87: #{net_forward.1} parent=73 // loop_footer_branch
                  %794 = sbr.rel target = $region83
                $region88: #{net_forward.1} parent=73 // loop_exit
                  _
              $region74: #{net_forward.1} parent=51 // pred_fallthru
                _
              // Predicated region
              $region89: #{net_forward.1} parent=51 // pred_check
                _
              $region90: #{net_forward.1} parent=51 // pred_check_branch
                %813 = sbr.rel target = $region92
              $region91: #{net_forward.1} parent=51 // pred_region
                _
              $region92: #{net_forward.1} parent=51 // pred_fallthru
                _
            $region52: #{net_forward.1} parent=47 // pred_fallthru
              _
            // Predicated region
            $region53: #{net_forward.1} parent=47 // pred_check
              _
            $region54: #{net_forward.1} parent=47 // pred_check_branch
              %697 = sbr.rel target = $region56
            $region55: #{net_forward.1} parent=47 // pred_region
              %s699 = ssub.s32 256, 1
              %s700 = sdiv.u32.pop %s686, 6
              %s701 = srem.u32.pop %s686, 6
              // While loop
              $region57: #{net_forward.1} parent=55 // loop_pre_header
                _
              $region58: #{net_forward.1} parent=55 // loop_header
                %s703 = sphi 0, %s705
                %p704 = scmp.ge.s32.totalorder %s703, %s700
                %s708 = sphi 0, %s725
                %s709 = sphi %s679, %s728
                %s710 = sphi %s690, %s729
              $region59: #{net_forward.1} parent=55 // loop_header_branch
                %707 = sbr.rel (%p704) target = $region63
              $region60: #{net_forward.1} parent=55 // loop_body
                %v711 = vld [vmem:[%s709] sm:%s699]
                %712 = vst [vmem:[%s710] sm:%s699] %v711
                %v713 = vld [vmem:[%s709 + $0x8] sm:%s699]
                %714 = vst [vmem:[%s710 + $0x8] sm:%s699] %v713
                %v715 = vld [vmem:[%s709 + $0x10] sm:%s699]
                %716 = vst [vmem:[%s710 + $0x10] sm:%s699] %v715
                %v717 = vld [vmem:[%s709 + $0x18] sm:%s699]
                %718 = vst [vmem:[%s710 + $0x18] sm:%s699] %v717
                %v719 = vld [vmem:[%s709 + $0x20] sm:%s699]
                %720 = vst [vmem:[%s710 + $0x20] sm:%s699] %v719
                %v721 = vld [vmem:[%s709 + $0x28] sm:%s699]
                %722 = vst [vmem:[%s710 + $0x28] sm:%s699] %v721
                %s723 = sadd.s32 1, %s708
                %p724 = scmp.ge.s32.totalorder %s723, %s700
                %s725 = scalar_select %p724, 0, %s723
                %s726 = smul.u32 %s725, 48
                %s727 = smul.u32 %s725, 48
                %s728 = scalar_lea.vmem %s679, %s726 [#allocation2]
                %s729 = scalar_lea.vmem %s690, %s727
              $region61: #{net_forward.1} parent=55 // loop_footer
                %s705 = sadd.s32 %s703, 1
              $region62: #{net_forward.1} parent=55 // loop_footer_branch
                %702 = sbr.rel target = $region58
              $region63: #{net_forward.1} parent=55 // loop_exit
                _
              %s730 = sdiv.u32.pop %s686, 6
              %s731 = srem.u32.pop %s686, 6
              %s732 = smul.u32 %s730, 6
              %s733 = smul.u32 8, %s732
              %s734 = scalar_lea.vmem %s679, %s733 [#allocation2]
              %s735 = smul.u32 8, %s732
              %s736 = scalar_lea.vmem %s690, %s735
              // While loop
              $region64: #{net_forward.1} parent=55 // loop_pre_header
                _
              $region65: #{net_forward.1} parent=55 // loop_header
                %s738 = sphi 0, %s740
                %p739 = scmp.ge.s32.totalorder %s738, %s731
                %s743 = sphi 0, %s750
                %s744 = sphi %s734, %s753
                %s745 = sphi %s736, %s754
              $region66: #{net_forward.1} parent=55 // loop_header_branch
                %742 = sbr.rel (%p739) target = $region70
              $region67: #{net_forward.1} parent=55 // loop_body
                %v746 = vld [vmem:[%s744] sm:%s699]
                %747 = vst [vmem:[%s745] sm:%s699] %v746
                %s748 = sadd.s32 1, %s743
                %p749 = scmp.ge.s32.totalorder %s748, %s731
                %s750 = scalar_select %p749, 0, %s748
                %s751 = smul.u32 %s750, 8
                %s752 = smul.u32 %s750, 8
                %s753 = scalar_lea.vmem %s734, %s751 [#allocation2]
                %s754 = scalar_lea.vmem %s736, %s752
              $region68: #{net_forward.1} parent=55 // loop_footer
                %s740 = sadd.s32 %s738, 1
              $region69: #{net_forward.1} parent=55 // loop_footer_branch
                %737 = sbr.rel target = $region65
              $region70: #{net_forward.1} parent=55 // loop_exit
                _
            $region56: #{net_forward.1} parent=47 // pred_fallthru
              _
          $region48: #{net_forward.1} parent=43 // pred_fallthru
            _
          %814 = vnop
        $region44: #{net_forward.1} parent=39 // pred_fallthru
          _
      $region40: #{net_forward.1} parent=5 // pred_fallthru
        _
      %p815 = scmp.le.s32.totalorder 2, %s11
      // Predicated region
      $region93: #{net_forward.1} parent=5 // pred_check
        %p816 = pneg %p815
      $region94: #{net_forward.1} parent=5 // pred_check_branch
        %818 = sbr.rel (%p816) target = $region96
      $region95: #{net_forward.1} parent=5 // pred_region
        %s819 = ssub.s32 %s11, 2
        // Predicated region
        $region97: #{net_forward.1} parent=95 // pred_check
          %p820 = pneg %p150
        $region98: #{net_forward.1} parent=95 // pred_check_branch
          %822 = sbr.rel (%p820) target = $region100
        $region99: #{net_forward.1} parent=95 // pred_region
          %s823 = sand.u32 %s135, 1
          %s824 = sand.u32 %s135, 1
          %s825 = smul.addr %s824, 48
          %s826 = scalar_lea.vmem [#allocation2], %s825
        $region100: #{net_forward.1} parent=95 // pred_fallthru
          _
      $region96: #{net_forward.1} parent=5 // pred_fallthru
        _
    $region6: #{net_forward.1} parent=1 // loop_footer
      %s15 = sadd.s32 1, %s11
    $region7: #{net_forward.1} parent=1 // loop_footer_branch
      %10 = sbr.rel target = $region3
    $region8: #{net_forward.1} parent=1 // loop_exit
      _

</llo_original>
